<compile_context>
chip_gen: v7x
topology: tpu7x:2x2x1
jax: 0.10.0
libtpu: 0.0.40
codegen_flags: <defaults>
</compile_context>

<pallas_src>
import jax
import jax.numpy as jnp
from jax.experimental import pallas as pl
from jax.experimental.pallas import tpu as pltpu


SAMPLE_INDEX = 3  # Vision.forward hardcodes preds[3] / batch[3]


def _vision_kernel(targ_ref, pred_ref,
                   pred_clip_ref, err_ref,
                   targ_img_ref, pred_img_ref, err_img_ref):
    # Each grid step sees a (Tb, C*HW) slab of frames, lane-dense along C*HW.
    HW = targ_img_ref.shape[-1]                       # channel-0 pixel count

    targ = targ_ref[...]                              # (Tb, C*HW) f32
    pred = jnp.clip(pred_ref[...], 0.0, 1.0)          # torch.clip(preds, 0, 1)
    pred_clip_ref[...] = pred

    err = jnp.abs(targ - pred)                        # error = |targ - pred|
    err_ref[...] = err

    # taxibj branch: channel 0 occupies the first HW lanes of the flattened
    # (C*HW) row-major layout; HW is a multiple of 128 so the slice is
    # tile-aligned (no lane shuffling / copies).
    t0 = targ[:, :HW]                                 # (Tb, HW)
    p0 = pred[:, :HW]
    e0 = err[:, :HW]

    t_min = jnp.min(t0, axis=-1, keepdims=True)       # (Tb, 1) per-frame scalars
    t_max = jnp.max(t0, axis=-1, keepdims=True)
    p_min = jnp.min(p0, axis=-1, keepdims=True)
    p_max = jnp.max(p0, axis=-1, keepdims=True)
    e_max = jnp.max(e0, axis=-1, keepdims=True)

    # Fused 255 * 1/denominator on the EUP (approx reciprocal — free slot in
    # this mem-bound kernel).  A constant frame (max == min) or an exact
    # prediction (e_max == 0) yields inf/NaN, exactly like the numpy reference.
    t_scale = 255.0 * pl.reciprocal(t_max - t_min, approx=True)
    p_scale = 255.0 * pl.reciprocal(p_max - p_min, approx=True)
    e_scale = 255.0 * pl.reciprocal(e_max, approx=True)

    # Clamp to [0, 255]: the approx reciprocal can push the max pixel slightly
    # above 255, which would wrap to 0 under the host-side np.uint8().
    targ_img_ref[...] = jnp.clip((t0 - t_min) * t_scale, 0.0, 255.0)
    pred_img_ref[...] = jnp.clip((p0 - p_min) * p_scale, 0.0, 255.0)
    err_img_ref[...] = jnp.clip(e0 * e_scale, 0.0, 255.0)


def _vmem_capacity_bytes(default=64 << 20):
    """VMEM capacity for this generation; default to the smallest (v7x)."""
    try:
        cap = getattr(pltpu.get_tpu_info(), "vmem_capacity_bytes", None)
        if cap:
            return int(cap)
    except Exception:
        pass
    return default


def _pick_frames_per_step(t_pad, bytes_per_frame, budget):
    """Largest multiple-of-8 divisor of t_pad whose double-buffered footprint
    fits `budget`; keep the grid >= 2 steps when possible (v7x megacore and
    input/output DMA overlap across steps)."""
    cands = [tb for tb in range(8, t_pad + 1, 8) if t_pad % tb == 0]
    if not cands:
        return t_pad
    fitting = [tb for tb in cands if 2 * tb * bytes_per_frame <= budget]
    tb = max(fitting) if fitting else min(cands)
    if tb == t_pad and t_pad >= 16:
        smaller = [c for c in cands if c <= t_pad // 2]
        if smaller:
            tb = max(smaller)
    return tb


def vision_forward(preds, batch, *, frames_per_step=None):
    """preds, batch: [B, T, C, H, W] float32.  Returns the numeric products of
    Vision.forward (taxibj branch) for sample index 3.

    Returns:
      pred_clip : [T, C, H, W]  clipped prediction (sample 3)
      error     : [T, C, H, W]  |targ - pred|
      targ_img  : [T, H, W]     255-scaled min-max normalized target (chan 0)
      pred_img  : [T, H, W]     255-scaled min-max normalized pred  (chan 0)
      err_img   : [T, H, W]     255 * err / err.max() per frame     (chan 0)
    """
    B, T, C, H, W = batch.shape
    assert preds.shape == batch.shape
    HW = H * W
    CHW = C * HW

    # Lane-dense layout: fold C into the lane dim.  Row-major reshape of a
    # contiguous array — free, no data movement, no extra HBM traffic.
    targ_f = batch.reshape(B, T, CHW)
    pred_f = preds.reshape(B, T, CHW)

    # Pad T up to a multiple of 8 so the frame axis can always be blocked in
    # multiples of 8 (padded frames are sliced off afterwards).
    t_pad = ((T + 7) // 8) * 8
    if t_pad != T:
        pad = ((0, 0), (0, t_pad - T), (0, 0))
        targ_f = jnp.pad(targ_f, pad)
        pred_f = jnp.pad(pred_f, pad)

    # Per-step VMEM footprint: 2 inputs + 2 full outputs (C*HW lanes) plus
    # 3 channel-0 image outputs (HW lanes), all float32, x2 double-buffering.
    bytes_per_frame = (4 * CHW + 3 * HW) * 4
    vmem_cap = _vmem_capacity_bytes()
    budget = vmem_cap // 2

    if frames_per_step is None:
        tb = _pick_frames_per_step(t_pad, bytes_per_frame, budget)
    else:
        tb = int(frames_per_step)
        if t_pad % tb != 0 or (tb % 8 != 0 and tb != t_pad):
            tb = _pick_frames_per_step(t_pad, bytes_per_frame, budget)

    grid = (t_pad // tb,)
    needed = 2 * tb * bytes_per_frame
    vmem_limit = int(min(vmem_cap * 3 // 4, max(needed + (4 << 20), 16 << 20)))

    # Sample selection (preds[3] / batch[3]) folded into the BlockSpec through
    # a squeezed leading dim: the kernel only ever DMAs sample 3's frames.
    in_spec = pl.BlockSpec((pl.Squeezed(), tb, CHW),
                           lambda t: (SAMPLE_INDEX, t, 0))
    full_spec = pl.BlockSpec((tb, CHW), lambda t: (t, 0))
    img_spec = pl.BlockSpec((tb, HW), lambda t: (t, 0))

    out_shapes = (
        jax.ShapeDtypeStruct((t_pad, CHW), jnp.float32),  # pred_clip
        jax.ShapeDtypeStruct((t_pad, CHW), jnp.float32),  # error
        jax.ShapeDtypeStruct((t_pad, HW), jnp.float32),   # targ_img
        jax.ShapeDtypeStruct((t_pad, HW), jnp.float32),   # pred_img
        jax.ShapeDtypeStruct((t_pad, HW), jnp.float32),   # err_img
    )
    # TODO(synk): the three image outputs could be emitted as uint8/bf16 to
    # cut write traffic ~4x, but that changes the float output contract here.
    # TODO(synk): for the 'human' branch with large H*W, add a second
    # ("arbitrary") grid axis over HW with running min/max scratch instead of
    # keeping HW full-extent.

    pred_clip, error, targ_img, pred_img, err_img = pl.pallas_call(
        _vision_kernel,
        out_shape=out_shapes,
        grid_spec=pltpu.PrefetchScalarGridSpec(
            num_scalar_prefetch=0,
            grid=grid,
            in_specs=[in_spec, in_spec],
            out_specs=[full_spec, full_spec, img_spec, img_spec, img_spec],
        ),
        compiler_params=pltpu.CompilerParams(
            dimension_semantics=("parallel",),
            vmem_limit_bytes=vmem_limit),
    )(targ_f, pred_f)

    return (pred_clip[:T].reshape(T, C, H, W),
            error[:T].reshape(T, C, H, W),
            targ_img[:T].reshape(T, H, W),
            pred_img[:T].reshape(T, H, W),
            err_img[:T].reshape(T, H, W))


def _reference(preds, batch):
    """Pure-JAX reference of the same numeric path (exact divides)."""
    targ = batch[SAMPLE_INDEX]
    pred = jnp.clip(preds, 0.0, 1.0)[SAMPLE_INDEX]
    err = jnp.abs(targ - pred)
    t0 = targ[:, 0]
    p0 = pred[:, 0]
    e0 = err[:, 0]
    t_min = t0.min(axis=(1, 2), keepdims=True)
    t_max = t0.max(axis=(1, 2), keepdims=True)
    p_min = p0.min(axis=(1, 2), keepdims=True)
    p_max = p0.max(axis=(1, 2), keepdims=True)
    e_max = e0.max(axis=(1, 2), keepdims=True)
    targ_img = 255.0 * (t0 - t_min) / (t_max - t_min)
    pred_img = 255.0 * (p0 - p_min) / (p_max - p_min)
    err_img = 255.0 * e0 / e_max
    return pred, err, targ_img, pred_img, err_img


if __name__ == "__main__":
    # Small shapes consistent with the forward: B=4 (index 3 must exist),
    # T=8 frames, C=2 channels (taxibj-like), H=W=16.
    key = jax.random.PRNGKey(0)
    k1, k2 = jax.random.split(key)
    B, T, C, H, W = 4, 8, 2, 16, 16
    # preds in a slightly wider range so clip(0,1) is exercised.
    preds = jax.random.uniform(k1, (B, T, C, H, W), jnp.float32, -0.2, 1.2)
    batch = jax.random.uniform(k2, (B, T, C, H, W), jnp.float32, 0.0, 1.0)

    outs = vision_forward(preds, batch)
    outs = jax.block_until_ready(outs)

    refs = _reference(preds, batch)
    # pred_clip / error: exact elementwise math -> tight tolerance.
    for o, r in zip(outs[:2], refs[:2]):
        assert o.shape == r.shape and o.dtype == r.dtype
        assert jnp.allclose(o, r, atol=1e-5, rtol=1e-5), "mismatch vs reference"
    # 0..255 images use the EUP approx reciprocal -> sub-pixel tolerance.
    for o, r in zip(outs[2:], refs[2:]):
        assert o.shape == r.shape and o.dtype == r.dtype
        assert jnp.allclose(o, r, atol=1.0, rtol=1e-2), "mismatch vs reference"

    # TODO(synk): file writing (plt.imsave / cv2.imwrite), colormap application
    # (cv2.applyColorMap / 'viridis'), and the uint8 byte conversion are
    # host-side I/O with no Pallas equivalent; np.uint8(outs[...]) on host.
    print("KERNEL_OK")
</pallas_src>

<mosaic_0001>
module attributes {stable_mosaic.version = 11 : i64} {
  func.func @_vision_kernel(%arg0: i32, %arg1: memref<1x8x512xf32, #tpu.memory_space<vmem>>, %arg2: memref<1x8x512xf32, #tpu.memory_space<vmem>>, %arg3: memref<8x512xf32, #tpu.memory_space<vmem>>, %arg4: memref<8x512xf32, #tpu.memory_space<vmem>>, %arg5: memref<8x256xf32, #tpu.memory_space<vmem>>, %arg6: memref<8x256xf32, #tpu.memory_space<vmem>>, %arg7: memref<8x256xf32, #tpu.memory_space<vmem>>) attributes {dimension_semantics = [#tpu.dimension_semantics<parallel>], iteration_bounds = array<i64: 1>, scalar_prefetch = 0 : i64, scratch_operands = 0 : i64, tpu.core_type = #tpu.core_type<tc>, window_params = [{transform_indices = @transform_0, window_bounds = array<i64: 1, 8, 512>}, {transform_indices = @transform_1, window_bounds = array<i64: 1, 8, 512>}, {transform_indices = @transform_2, window_bounds = array<i64: 8, 512>}, {transform_indices = @transform_3, window_bounds = array<i64: 8, 512>}, {transform_indices = @transform_4, window_bounds = array<i64: 8, 256>}, {transform_indices = @transform_5, window_bounds = array<i64: 8, 256>}, {transform_indices = @transform_6, window_bounds = array<i64: 8, 256>}]} {
    %c0 = arith.constant 0 : index
    %c0_0 = arith.constant 0 : index
    %c0_1 = arith.constant 0 : index
    %0 = vector.load %arg1[%c0, %c0_0, %c0_1] : memref<1x8x512xf32, #tpu.memory_space<vmem>>, vector<1x8x512xf32>
    %1 = vector.shape_cast %0 : vector<1x8x512xf32> to vector<8x512xf32>
    %c0_2 = arith.constant 0 : index
    %c0_3 = arith.constant 0 : index
    %c0_4 = arith.constant 0 : index
    %2 = vector.load %arg2[%c0_2, %c0_3, %c0_4] : memref<1x8x512xf32, #tpu.memory_space<vmem>>, vector<1x8x512xf32>
    %3 = vector.shape_cast %2 : vector<1x8x512xf32> to vector<8x512xf32>
    %cst = arith.constant 0.000000e+00 : f32
    %cst_5 = arith.constant 1.000000e+00 : f32
    %4 = vector.broadcast %cst : f32 to vector<8x512xf32>
    %5 = arith.maximumf %4, %3 : vector<8x512xf32>
    %6 = vector.broadcast %cst_5 : f32 to vector<8x512xf32>
    %7 = arith.minimumf %6, %5 : vector<8x512xf32>
    %c0_6 = arith.constant 0 : index
    %c0_7 = arith.constant 0 : index
    %8 = vector.load %arg3[%c0_6, %c0_7] : memref<8x512xf32, #tpu.memory_space<vmem>>, vector<8x512xf32>
    tpu.vector_store %arg3[%c0_6, %c0_7], %7 {strides = array<i32>} : memref<8x512xf32, #tpu.memory_space<vmem>>, vector<8x512xf32>,
    %9 = arith.subf %1, %7 : vector<8x512xf32>
    %10 = math.absf %9 : vector<8x512xf32>
    %c0_8 = arith.constant 0 : index
    %c0_9 = arith.constant 0 : index
    %11 = vector.load %arg4[%c0_8, %c0_9] : memref<8x512xf32, #tpu.memory_space<vmem>>, vector<8x512xf32>
    tpu.vector_store %arg4[%c0_8, %c0_9], %10 {strides = array<i32>} : memref<8x512xf32, #tpu.memory_space<vmem>>, vector<8x512xf32>,
    %12 = vector.extract_strided_slice %1 {offsets = [0, 0], sizes = [8, 256], strides = [1, 1]} : vector<8x512xf32> to vector<8x256xf32>
    %13 = vector.extract_strided_slice %7 {offsets = [0, 0], sizes = [8, 256], strides = [1, 1]} : vector<8x512xf32> to vector<8x256xf32>
    %14 = vector.extract_strided_slice %10 {offsets = [0, 0], sizes = [8, 256], strides = [1, 1]} : vector<8x512xf32> to vector<8x256xf32>
    %cst_10 = arith.constant dense<0x7F800000> : vector<8xf32>
    %15 = vector.multi_reduction <minimumf>, %12, %cst_10 [1] : vector<8x256xf32> to vector<8xf32>
    %16 = vector.shape_cast %15 : vector<8xf32> to vector<8x1xf32>
    %cst_11 = arith.constant dense<0xFF800000> : vector<8xf32>
    %17 = vector.multi_reduction <maximumf>, %12, %cst_11 [1] : vector<8x256xf32> to vector<8xf32>
    %18 = vector.shape_cast %17 : vector<8xf32> to vector<8x1xf32>
    %cst_12 = arith.constant dense<0x7F800000> : vector<8xf32>
    %19 = vector.multi_reduction <minimumf>, %13, %cst_12 [1] : vector<8x256xf32> to vector<8xf32>
    %20 = vector.shape_cast %19 : vector<8xf32> to vector<8x1xf32>
    %cst_13 = arith.constant dense<0xFF800000> : vector<8xf32>
    %21 = vector.multi_reduction <maximumf>, %13, %cst_13 [1] : vector<8x256xf32> to vector<8xf32>
    %22 = vector.shape_cast %21 : vector<8xf32> to vector<8x1xf32>
    %cst_14 = arith.constant dense<0xFF800000> : vector<8xf32>
    %23 = vector.multi_reduction <maximumf>, %14, %cst_14 [1] : vector<8x256xf32> to vector<8xf32>
    %24 = vector.shape_cast %23 : vector<8xf32> to vector<8x1xf32>
    %25 = arith.subf %18, %16 : vector<8x1xf32>
    %26 = tpu.reciprocal %25 {approx = true} : vector<8x1xf32> -> vector<8x1xf32>
    %cst_15 = arith.constant 2.550000e+02 : f32
    %27 = vector.broadcast %cst_15 : f32 to vector<8x1xf32>
    %28 = arith.mulf %27, %26 : vector<8x1xf32>
    %29 = arith.subf %22, %20 : vector<8x1xf32>
    %30 = tpu.reciprocal %29 {approx = true} : vector<8x1xf32> -> vector<8x1xf32>
    %cst_16 = arith.constant 2.550000e+02 : f32
    %31 = vector.broadcast %cst_16 : f32 to vector<8x1xf32>
    %32 = arith.mulf %31, %30 : vector<8x1xf32>
    %33 = tpu.reciprocal %24 {approx = true} : vector<8x1xf32> -> vector<8x1xf32>
    %cst_17 = arith.constant 2.550000e+02 : f32
    %34 = vector.broadcast %cst_17 : f32 to vector<8x1xf32>
    %35 = arith.mulf %34, %33 : vector<8x1xf32>
    %36 = vector.broadcast %16 : vector<8x1xf32> to vector<8x256xf32>
    %37 = arith.subf %12, %36 : vector<8x256xf32>
    %38 = vector.broadcast %28 : vector<8x1xf32> to vector<8x256xf32>
    %39 = arith.mulf %37, %38 : vector<8x256xf32>
    %cst_18 = arith.constant 0.000000e+00 : f32
    %cst_19 = arith.constant 2.550000e+02 : f32
    %40 = vector.broadcast %cst_18 : f32 to vector<8x256xf32>
    %41 = arith.maximumf %40, %39 : vector<8x256xf32>
    %42 = vector.broadcast %cst_19 : f32 to vector<8x256xf32>
    %43 = arith.minimumf %42, %41 : vector<8x256xf32>
    %c0_20 = arith.constant 0 : index
    %c0_21 = arith.constant 0 : index
    %44 = vector.load %arg5[%c0_20, %c0_21] : memref<8x256xf32, #tpu.memory_space<vmem>>, vector<8x256xf32>
    tpu.vector_store %arg5[%c0_20, %c0_21], %43 {strides = array<i32>} : memref<8x256xf32, #tpu.memory_space<vmem>>, vector<8x256xf32>,
    %45 = vector.broadcast %20 : vector<8x1xf32> to vector<8x256xf32>
    %46 = arith.subf %13, %45 : vector<8x256xf32>
    %47 = vector.broadcast %32 : vector<8x1xf32> to vector<8x256xf32>
    %48 = arith.mulf %46, %47 : vector<8x256xf32>
    %cst_22 = arith.constant 0.000000e+00 : f32
    %cst_23 = arith.constant 2.550000e+02 : f32
    %49 = vector.broadcast %cst_22 : f32 to vector<8x256xf32>
    %50 = arith.maximumf %49, %48 : vector<8x256xf32>
    %51 = vector.broadcast %cst_23 : f32 to vector<8x256xf32>
    %52 = arith.minimumf %51, %50 : vector<8x256xf32>
    %c0_24 = arith.constant 0 : index
    %c0_25 = arith.constant 0 : index
    %53 = vector.load %arg6[%c0_24, %c0_25] : memref<8x256xf32, #tpu.memory_space<vmem>>, vector<8x256xf32>
    tpu.vector_store %arg6[%c0_24, %c0_25], %52 {strides = array<i32>} : memref<8x256xf32, #tpu.memory_space<vmem>>, vector<8x256xf32>,
    %54 = vector.broadcast %35 : vector<8x1xf32> to vector<8x256xf32>
    %55 = arith.mulf %14, %54 : vector<8x256xf32>
    %cst_26 = arith.constant 0.000000e+00 : f32
    %cst_27 = arith.constant 2.550000e+02 : f32
    %56 = vector.broadcast %cst_26 : f32 to vector<8x256xf32>
    %57 = arith.maximumf %56, %55 : vector<8x256xf32>
    %58 = vector.broadcast %cst_27 : f32 to vector<8x256xf32>
    %59 = arith.minimumf %58, %57 : vector<8x256xf32>
    %c0_28 = arith.constant 0 : index
    %c0_29 = arith.constant 0 : index
    %60 = vector.load %arg7[%c0_28, %c0_29] : memref<8x256xf32, #tpu.memory_space<vmem>>, vector<8x256xf32>
    tpu.vector_store %arg7[%c0_28, %c0_29], %59 {strides = array<i32>} : memref<8x256xf32, #tpu.memory_space<vmem>>, vector<8x256xf32>,
    return
  }
  func.func @transform_0(%arg0: i32) -> (i32, i32, i32) {
    %c3_i32 = arith.constant 3 : i32
    %c0_i32 = arith.constant 0 : i32
    %c0_i32_0 = arith.constant 0 : i32
    return %c3_i32, %arg0, %c0_i32 : i32, i32, i32
  }
  func.func @transform_1(%arg0: i32) -> (i32, i32, i32) {
    %c3_i32 = arith.constant 3 : i32
    %c0_i32 = arith.constant 0 : i32
    %c0_i32_0 = arith.constant 0 : i32
    return %c3_i32, %arg0, %c0_i32 : i32, i32, i32
  }
  func.func @transform_2(%arg0: i32) -> (i32, i32) {
    %c0_i32 = arith.constant 0 : i32
    %c0_i32_0 = arith.constant 0 : i32
    return %arg0, %c0_i32 : i32, i32
  }
  func.func @transform_3(%arg0: i32) -> (i32, i32) {
    %c0_i32 = arith.constant 0 : i32
    %c0_i32_0 = arith.constant 0 : i32
    return %arg0, %c0_i32 : i32, i32
  }
  func.func @transform_4(%arg0: i32) -> (i32, i32) {
    %c0_i32 = arith.constant 0 : i32
    %c0_i32_0 = arith.constant 0 : i32
    return %arg0, %c0_i32 : i32, i32
  }
  func.func @transform_5(%arg0: i32) -> (i32, i32) {
    %c0_i32 = arith.constant 0 : i32
    %c0_i32_0 = arith.constant 0 : i32
    return %arg0, %c0_i32 : i32, i32
  }
  func.func @transform_6(%arg0: i32) -> (i32, i32) {
    %c0_i32 = arith.constant 0 : i32
    %c0_i32_0 = arith.constant 0 : i32
    return %arg0, %c0_i32 : i32, i32
  }
}

</mosaic_0001>

<llo_original>
// kernel: tpu_custom_call.1
$region0: #{tpu_custom_call.1}
  #allocation0 [shape = 'u32[]', space=smem, size = 0x4, offset = 0x4, fixed_abs, tag = 'smem constant byte address 0x4 - core index']
  #allocation1 [shape = 'u32[144,128]{1,0:T(1,128)}', space=vmem, size = 0x12000, scoped, tag = 'internal scratch']
  %s0 = inlined_call_operand.hbm [shape: f32[4,8,512], index: 0, kind: input, shape index: {}]
  %s1 = inlined_call_operand.hbm [shape: f32[4,8,512], index: 1, kind: input, shape index: {}]
  %s2 = inlined_call_operand.hbm [shape: f32[8,512], index: 2, kind: output, shape index: {0}]
  %s3 = inlined_call_operand.hbm [shape: f32[8,512], index: 3, kind: output, shape index: {1}]
  %s4 = inlined_call_operand.hbm [shape: f32[8,256], index: 4, kind: output, shape index: {2}]
  %s5 = inlined_call_operand.hbm [shape: f32[8,256], index: 5, kind: output, shape index: {3}]
  %s6 = inlined_call_operand.hbm [shape: f32[8,256], index: 6, kind: output, shape index: {4}]
  %7 = xla_tuple %s2, %s3, %s4, %s5, %s6
  %s8 = sld [smem:[#allocation0]]
  $region58: #{tpu_custom_call.1} parent=0
    _
  %s10 = ssub.s32 1, %s8
  %s11 = scalar_select 0, %s10, %s8
  $region1: #{tpu_custom_call.1} parent=0
    #allocation2 [shape = 'u8[16384]{0}', space=vmem, size = 0x4000, scoped, tag = 'input window, operand 0, single buffered']
    #allocation3 [shape = 's32[1]{0}', space=sflag, size = 0x4, scoped, tag = 'scoped memory for tpu_custom_call.1']
    #allocation4 [shape = 's32[1]{0}', space=sflag, size = 0x4, scoped, tag = 'scoped memory for tpu_custom_call.1']
    #allocation5 [shape = 'u8[16384]{0}', space=vmem, size = 0x4000, scoped, tag = 'input window, operand 1, single buffered']
    #allocation6 [shape = 's32[1]{0}', space=sflag, size = 0x4, scoped, tag = 'scoped memory for tpu_custom_call.1']
    #allocation7 [shape = 'u8[16384]{0}', space=vmem, size = 0x4000, scoped, tag = 'output window, operand 0, single buffered']
    #allocation8 [shape = 'u8[16384]{0}', space=vmem, size = 0x4000, scoped, tag = 'output window, operand 1, single buffered']
    #allocation9 [shape = 's32[1]{0}', space=sflag, size = 0x4, scoped, tag = 'scoped memory for tpu_custom_call.1']
    #allocation10 [shape = 'u8[8192]{0}', space=vmem, size = 0x2000, scoped, tag = 'output window, operand 2, single buffered']
    #allocation11 [shape = 'u8[8192]{0}', space=vmem, size = 0x2000, scoped, tag = 'output window, operand 3, single buffered']
    #allocation12 [shape = 's32[1]{0}', space=sflag, size = 0x4, scoped, tag = 'scoped memory for tpu_custom_call.1']
    #allocation13 [shape = 'u8[8192]{0}', space=vmem, size = 0x2000, scoped, tag = 'output window, operand 4, single buffered']
    %12 = vsyncpa [#allocation3], 0
    %13 = vsyncpa [#allocation6], 0
    %14 = vsyncpa [#allocation4], 0
    %15 = vsyncpa [#allocation9], 0
    %16 = vsyncpa [#allocation12], 0
    // Predicated region
    $region2: #{tpu_custom_call.1} parent=1 // pred_check
      _
    $region3: #{tpu_custom_call.1} parent=1 // pred_check_branch
      %18 = sbr.rel (0) target = $region5
    $region4: #{tpu_custom_call.1} parent=1 // pred_region
      %s20 = ssub.s32 512, 512
      %21 = vsyncadd [#allocation3], %s20
      %s22 = scalar_lea.hbm %s0, 1536
      %s24 = sshll.u32 [#allocation2], 4
      %s25 = int_to_ptr.vmem [resolvable:$true] %s24
      %27 = dma.hbm_to_vmem [thread:$0]  %s22, 512, %s25, [#allocation3]
    $region5: #{tpu_custom_call.1} parent=1 // pred_fallthru
      _
    // Predicated region
    $region6: #{tpu_custom_call.1} parent=1 // pred_check
      _
    $region7: #{tpu_custom_call.1} parent=1 // pred_check_branch
      %29 = sbr.rel (0) target = $region9
    $region8: #{tpu_custom_call.1} parent=1 // pred_region
      %s31 = ssub.s32 512, 512
      %32 = vsyncadd [#allocation6], %s31
      %s33 = scalar_lea.hbm %s1, 1536
      %s35 = sshll.u32 [#allocation5], 4
      %s36 = int_to_ptr.vmem [resolvable:$true] %s35
      %38 = dma.hbm_to_vmem [thread:$0]  %s33, 512, %s36, [#allocation6]
    $region9: #{tpu_custom_call.1} parent=1 // pred_fallthru
      _
    // Predicated region
    $region10: #{tpu_custom_call.1} parent=1 // pred_check
      _
    $region11: #{tpu_custom_call.1} parent=1 // pred_check_branch
      %40 = sbr.rel (0) target = $region13
    $region12: #{tpu_custom_call.1} parent=1 // pred_region
      %41 = dma.done [#allocation3], 512
    $region13: #{tpu_custom_call.1} parent=1 // pred_fallthru
      _
    // Predicated region
    $region14: #{tpu_custom_call.1} parent=1 // pred_check
      _
    $region15: #{tpu_custom_call.1} parent=1 // pred_check_branch
      %43 = sbr.rel (0) target = $region17
    $region16: #{tpu_custom_call.1} parent=1 // pred_region
      %44 = dma.done [#allocation6], 512
    $region17: #{tpu_custom_call.1} parent=1 // pred_fallthru
      _
    %v45 = vld [vmem:[#allocation2] sm:$0xff]
    %v46 = vld [vmem:[#allocation2 + $0x8] sm:$0xff]
    %v47 = vld [vmem:[#allocation2 + $0x10] sm:$0xff]
    %v48 = vld [vmem:[#allocation2 + $0x18] sm:$0xff]
    %v49 = vld [vmem:[#allocation5] sm:$0xff]
    %v50 = vld [vmem:[#allocation5 + $0x8] sm:$0xff]
    %v51 = vld [vmem:[#allocation5 + $0x10] sm:$0xff]
    %v52 = vld [vmem:[#allocation5 + $0x18] sm:$0xff]
    %v53 = vmax.f32 %v49, 0.0
    %v54 = vmax.f32 %v50, 0.0
    %v55 = vmax.f32 %v51, 0.0
    %v56 = vmax.f32 %v52, 0.0
    %v57 = vmin.f32 %v53, 1.0
    %v58 = vmin.f32 %v54, 1.0
    %v59 = vmin.f32 %v55, 1.0
    %v60 = vmin.f32 %v56, 1.0
    %61 = vst [vmem:[#allocation7] sm:$0xff] %v57
    %62 = vst [vmem:[#allocation7 + $0x8] sm:$0xff] %v58
    %63 = vst [vmem:[#allocation7 + $0x10] sm:$0xff] %v59
    %64 = vst [vmem:[#allocation7 + $0x18] sm:$0xff] %v60
    %v65 = vsub.f32 %v45, %v57
    %v66 = vsub.f32 %v46, %v58
    %v67 = vsub.f32 %v47, %v59
    %v68 = vsub.f32 %v48, %v60
    %v69 = vand.u32 2147483647, %v65
    %v70 = vand.u32 2147483647, %v66
    %v71 = vand.u32 2147483647, %v67
    %v72 = vand.u32 2147483647, %v68
    %73 = vst [vmem:[#allocation8] sm:$0xff] %v69
    %74 = vst [vmem:[#allocation8 + $0x8] sm:$0xff] %v70
    %75 = vst [vmem:[#allocation8 + $0x10] sm:$0xff] %v71
    %76 = vst [vmem:[#allocation8 + $0x18] sm:$0xff] %v72
    %v77 = vmin.f32 %v45, %v46
    %78 = vmin.xlane.f32.xlu0 %v77
    %v79 = vpop.xlane.xlu0 %78
    %v80 = vmax.f32 %v45, %v46
    %81 = vmax.xlane.f32.xlu0 %v80
    %v82 = vpop.xlane.xlu0 %81
    %v83 = vmin.f32 %v57, %v58
    %84 = vmin.xlane.f32.xlu0 %v83
    %v85 = vpop.xlane.xlu0 %84
    %v86 = vmax.f32 %v57, %v58
    %87 = vmax.xlane.f32.xlu0 %v86
    %v88 = vpop.xlane.xlu0 %87
    %v89 = vmax.f32 %v69, %v70
    %90 = vmax.xlane.f32.xlu0 %v89
    %v91 = vpop.xlane.xlu0 %90
    %v92 = vsub.f32 %v82, %v79
    %v93 = vrcp.pop %v92
    %v94 = vmul.f32 %v93, 255.0
    %v95 = vsub.f32 %v88, %v85
    %v96 = vrcp.pop %v95
    %v97 = vmul.f32 %v96, 255.0
    %v98 = vrcp.pop %v91
    %v99 = vmul.f32 %v98, 255.0
    %v100 = vsub.f32 %v45, %v79
    %v101 = vsub.f32 %v46, %v79
    %v102 = vmul.f32 %v100, %v94
    %v103 = vmul.f32 %v101, %v94
    %v104 = vmax.f32 %v102, 0.0
    %v105 = vmax.f32 %v103, 0.0
    %v106 = vmin.f32 %v104, 255.0
    %v107 = vmin.f32 %v105, 255.0
    %108 = vst [vmem:[#allocation10] sm:$0xff] %v106
    %109 = vst [vmem:[#allocation10 + $0x8] sm:$0xff] %v107
    %v110 = vsub.f32 %v57, %v85
    %v111 = vsub.f32 %v58, %v85
    %v112 = vmul.f32 %v110, %v97
    %v113 = vmul.f32 %v111, %v97
    %v114 = vmax.f32 %v112, 0.0
    %v115 = vmax.f32 %v113, 0.0
    %v116 = vmin.f32 %v114, 255.0
    %v117 = vmin.f32 %v115, 255.0
    %118 = vst [vmem:[#allocation11] sm:$0xff] %v116
    %119 = vst [vmem:[#allocation11 + $0x8] sm:$0xff] %v117
    %v120 = vmul.f32 %v69, %v99
    %v121 = vmul.f32 %v70, %v99
    %v122 = vmax.f32 %v120, 0.0
    %v123 = vmax.f32 %v121, 0.0
    %v124 = vmin.f32 %v122, 255.0
    %v125 = vmin.f32 %v123, 255.0
    %126 = vst [vmem:[#allocation13] sm:$0xff] %v124
    %127 = vst [vmem:[#allocation13 + $0x8] sm:$0xff] %v125
    // Predicated region
    $region18: #{tpu_custom_call.1} parent=1 // pred_check
      _
    $region19: #{tpu_custom_call.1} parent=1 // pred_check_branch
      %129 = sbr.rel (0) target = $region21
    $region20: #{tpu_custom_call.1} parent=1 // pred_region
      %s131 = ssub.s32 512, 512
      %132 = vsyncadd [#allocation4], %s131
      %s134 = sshll.u32 [#allocation7], 4
      %s135 = int_to_ptr.vmem [resolvable:$true] %s134
      %137 = dma.vmem_to_hbm [thread:$0]  %s135, 512, %s2, [#allocation4]
    $region21: #{tpu_custom_call.1} parent=1 // pred_fallthru
      _
    // Predicated region
    $region22: #{tpu_custom_call.1} parent=1 // pred_check
      _
    $region23: #{tpu_custom_call.1} parent=1 // pred_check_branch
      %139 = sbr.rel (0) target = $region25
    $region24: #{tpu_custom_call.1} parent=1 // pred_region
      %s141 = ssub.s32 512, 512
      %142 = vsyncadd [#allocation9], %s141
      %s144 = sshll.u32 [#allocation8], 4
      %s145 = int_to_ptr.vmem [resolvable:$true] %s144
      %147 = dma.vmem_to_hbm [thread:$0]  %s145, 512, %s3, [#allocation9]
    $region25: #{tpu_custom_call.1} parent=1 // pred_fallthru
      _
    // Predicated region
    $region26: #{tpu_custom_call.1} parent=1 // pred_check
      _
    $region27: #{tpu_custom_call.1} parent=1 // pred_check_branch
      %149 = sbr.rel (0) target = $region29
    $region28: #{tpu_custom_call.1} parent=1 // pred_region
      %s151 = ssub.s32 256, 256
      %152 = vsyncadd [#allocation9], %s151
      %s154 = sshll.u32 [#allocation10], 4
      %s155 = int_to_ptr.vmem [resolvable:$true] %s154
      %157 = dma.vmem_to_hbm [thread:$0]  %s155, 256, %s4, [#allocation9]
    $region29: #{tpu_custom_call.1} parent=1 // pred_fallthru
      _
    // Predicated region
    $region30: #{tpu_custom_call.1} parent=1 // pred_check
      _
    $region31: #{tpu_custom_call.1} parent=1 // pred_check_branch
      %159 = sbr.rel (0) target = $region33
    $region32: #{tpu_custom_call.1} parent=1 // pred_region
      %s161 = ssub.s32 256, 256
      %162 = vsyncadd [#allocation12], %s161
      %s164 = sshll.u32 [#allocation11], 4
      %s165 = int_to_ptr.vmem [resolvable:$true] %s164
      %167 = dma.vmem_to_hbm [thread:$0]  %s165, 256, %s5, [#allocation12]
    $region33: #{tpu_custom_call.1} parent=1 // pred_fallthru
      _
    // Predicated region
    $region34: #{tpu_custom_call.1} parent=1 // pred_check
      _
    $region35: #{tpu_custom_call.1} parent=1 // pred_check_branch
      %169 = sbr.rel (0) target = $region37
    $region36: #{tpu_custom_call.1} parent=1 // pred_region
      %s171 = ssub.s32 256, 256
      %172 = vsyncadd [#allocation12], %s171
      %s174 = sshll.u32 [#allocation13], 4
      %s175 = int_to_ptr.vmem [resolvable:$true] %s174
      %177 = dma.vmem_to_hbm [thread:$0]  %s175, 256, %s6, [#allocation12]
    $region37: #{tpu_custom_call.1} parent=1 // pred_fallthru
      _
    // Predicated region
    $region38: #{tpu_custom_call.1} parent=1 // pred_check
      _
    $region39: #{tpu_custom_call.1} parent=1 // pred_check_branch
      %179 = sbr.rel (0) target = $region41
    $region40: #{tpu_custom_call.1} parent=1 // pred_region
      %180 = dma.done [#allocation4], 512
    $region41: #{tpu_custom_call.1} parent=1 // pred_fallthru
      _
    // Predicated region
    $region42: #{tpu_custom_call.1} parent=1 // pred_check
      _
    $region43: #{tpu_custom_call.1} parent=1 // pred_check_branch
      %182 = sbr.rel (0) target = $region45
    $region44: #{tpu_custom_call.1} parent=1 // pred_region
      %183 = dma.done [#allocation9], 512
    $region45: #{tpu_custom_call.1} parent=1 // pred_fallthru
      _
    // Predicated region
    $region46: #{tpu_custom_call.1} parent=1 // pred_check
      _
    $region47: #{tpu_custom_call.1} parent=1 // pred_check_branch
      %185 = sbr.rel (0) target = $region49
    $region48: #{tpu_custom_call.1} parent=1 // pred_region
      %186 = dma.done [#allocation9], 256
    $region49: #{tpu_custom_call.1} parent=1 // pred_fallthru
      _
    // Predicated region
    $region50: #{tpu_custom_call.1} parent=1 // pred_check
      _
    $region51: #{tpu_custom_call.1} parent=1 // pred_check_branch
      %188 = sbr.rel (0) target = $region53
    $region52: #{tpu_custom_call.1} parent=1 // pred_region
      %189 = dma.done [#allocation12], 256
    $region53: #{tpu_custom_call.1} parent=1 // pred_fallthru
      _
    // Predicated region
    $region54: #{tpu_custom_call.1} parent=1 // pred_check
      _
    $region55: #{tpu_custom_call.1} parent=1 // pred_check_branch
      %191 = sbr.rel (0) target = $region57
    $region56: #{tpu_custom_call.1} parent=1 // pred_region
      %192 = dma.done [#allocation12], 256
    $region57: #{tpu_custom_call.1} parent=1 // pred_fallthru
      _
    %193 = vsyncpa [#allocation3], 1
    %194 = vsyncpa [#allocation6], 1
    %195 = vsyncpa [#allocation4], 1
    %196 = vsyncpa [#allocation9], 1
    %197 = vsyncpa [#allocation12], 1

</llo_original>
